<compile_context>
chip_gen: v7x
topology: tpu7x:2x2x1
jax: 0.10.0
libtpu: 0.0.40
codegen_flags: <defaults>
</compile_context>

<pallas_src>
import functools

import jax
import jax.numpy as jnp
from jax import lax
from jax.experimental import pallas as pl
from jax.experimental.pallas import tpu as pltpu


def _cdiv(a, b):
    return -(-a // b)


def _round_up(v, m):
    return _cdiv(v, m) * m


def _vmem_capacity_bytes():
    try:
        return int(pltpu.get_tpu_info().vmem_capacity_bytes)
    except Exception:
        return 64 << 20  # conservative fallback: v7x has 64 MiB per TensorCore


def _matmul_kernel(m_ref, w_ref, out_ref, acc_ref):
    # m_ref:   (tb, tk)   pre-scaled activation tile, compute dtype
    # w_ref:   (tk, tn)   weight tile, compute dtype
    # out_ref: (tb, tn)   output tile (lane-dense)
    # acc_ref: (tb, tn)   f32 accumulator, resident across the K grid axis
    k = pl.program_id(2)

    @pl.when(k == 0)
    def _():
        acc_ref[...] = jnp.zeros_like(acc_ref)

    acc_ref[...] += jnp.dot(m_ref[...], w_ref[...],
                            preferred_element_type=jnp.float32)

    @pl.when(k == pl.num_programs(2) - 1)
    def _():
        out_ref[...] = acc_ref[...].astype(out_ref.dtype)


@functools.partial(
    jax.jit,
    static_argnames=("tb_max", "tn_max", "tk_max", "compute_dtype",
                     "w_buffer_count"),
)
def normal_hash_linear(x, w, o, time, *, tb_max=512, tn_max=2048, tk_max=2048,
                       compute_dtype=jnp.bfloat16, w_buffer_count=2):
    """Forward of NormalHashLinear: (x * o[:, time]) @ w.

    x: (B, n_in), w: (n_in, n_out), o: (n_in, period), time: int scalar.
    Returns (B, n_out) with x.dtype.  bias is unused in forward (matches PyTorch).
    """
    B, n_in = x.shape
    k_in, n_out = w.shape
    assert k_in == n_in, "w must be (n_in, n_out)"

    out_dtype = x.dtype
    cdt = jnp.dtype(compute_dtype if compute_dtype is not None else x.dtype)
    cbytes = cdt.itemsize
    obytes = jnp.dtype(out_dtype).itemsize

    # --- wrapper-side scale: m = x * o[:, time], done once, then cast --------
    # (dynamic_slice clamps an out-of-range `time` instead of erroring; that is
    #  the only semantic delta vs PyTorch indexing.)
    time = jnp.asarray(time, jnp.int32)
    o_col = lax.dynamic_slice_in_dim(o, time, 1, axis=1)        # (n_in, 1)
    o_row = jnp.transpose(o_col, (1, 0)).astype(x.dtype)        # (1, n_in)
    m = (x * o_row).astype(cdt)                                 # (B, n_in)
    w = w.astype(cdt)

    # --- tile selection (balanced so padding blow-up is avoided) -------------
    b_align = 16 if cbytes == 2 else 8
    tb = _round_up(_cdiv(B, max(1, _cdiv(B, tb_max))), b_align)
    tk = _round_up(_cdiv(n_in, max(1, _cdiv(n_in, tk_max))), 128)
    tn = _round_up(_cdiv(n_out, max(1, _cdiv(n_out, tn_max))), 128)

    vmem_cap = _vmem_capacity_bytes()
    tile_budget = (vmem_cap * 5) // 8        # leave headroom for compiler scratch

    def working_set(tb_, tk_, tn_):
        return (2 * tb_ * tk_ * cbytes                    # m tiles, double-buffered
                + w_buffer_count * tk_ * tn_ * cbytes     # w tiles
                + 2 * tb_ * tn_ * obytes                  # out tiles
                + tb_ * tn_ * 4)                          # f32 accumulator

    # Shrink tiles until the working set fits the per-generation VMEM budget.
    while working_set(tb, tk, tn) > tile_budget:
        if tk >= tn and tk > 128:
            tk = max(128, tk // 2)
        elif tn > 128:
            tn = max(128, tn // 2)
        elif tb > b_align:
            tb = max(b_align, _round_up(tb // 2, b_align))
        else:
            break

    # v7x has two TensorCores: guarantee >= 2 blocks on the parallel axes when
    # possible (harmless on single-TC v5e/v6e).
    if _round_up(B, tb) // tb == 1 and _round_up(n_out, tn) // tn == 1:
        if n_out > 128 and tn > 128:
            tn = _round_up(_cdiv(n_out, 2), 128)
        elif B > b_align and tb > b_align:
            tb = _round_up(_cdiv(B, 2), b_align)

    Bp = _round_up(B, tb)
    Kp = _round_up(n_in, tk)
    Np = _round_up(n_out, tn)

    if (Bp, Kp) != (B, n_in):
        m = jnp.pad(m, ((0, Bp - B), (0, Kp - n_in)))
    if (Kp, Np) != (n_in, n_out):
        w = jnp.pad(w, ((0, Kp - n_in), (0, Np - n_out)))

    gi, gj, gk = Bp // tb, Np // tn, Kp // tk
    grid = (gi, gj, gk)

    vmem_limit = int(min(working_set(tb, tk, tn) + (8 << 20),
                         (vmem_cap * 3) // 4))
    vmem_limit = max(vmem_limit, 16 << 20)

    cost = pl.CostEstimate(
        flops=2 * B * n_in * n_out,
        transcendentals=0,
        bytes_accessed=int(gj * Bp * Kp * cbytes      # m re-streamed per N tile
                           + gi * Kp * Np * cbytes    # w re-streamed per B tile
                           + Bp * Np * obytes),
    )

    w_spec_kwargs = {}
    if w_buffer_count != 2:
        # Deeper pipelining of the weight stream (e.g. 3 on v5e where the
        # weight DMA is the exposed cost).  Default stays at double-buffering.
        w_spec_kwargs["pipeline_mode"] = pl.Buffered(w_buffer_count)

    grid_spec = pltpu.PrefetchScalarGridSpec(
        num_scalar_prefetch=0,
        grid=grid,
        in_specs=[
            pl.BlockSpec((tb, tk), lambda i, j, k: (i, k)),                  # m tile
            pl.BlockSpec((tk, tn), lambda i, j, k: (k, j), **w_spec_kwargs),  # w tile
        ],
        out_specs=pl.BlockSpec((tb, tn), lambda i, j, k: (i, j)),
        scratch_shapes=[pltpu.VMEM((tb, tn), jnp.float32)],
    )

    out_padded = pl.pallas_call(
        _matmul_kernel,
        out_shape=jax.ShapeDtypeStruct((Bp, Np), out_dtype),
        grid_spec=grid_spec,
        compiler_params=pltpu.CompilerParams(
            dimension_semantics=("parallel", "parallel", "arbitrary"),
            vmem_limit_bytes=vmem_limit,
        ),
        cost_estimate=cost,
    )(m, w)

    return out_padded[:B, :n_out]


def reference(x, w, o, time):
    # High-precision reference of the PyTorch forward (bias unused).
    m = x * o[:, time][None, :]
    return jnp.dot(m, w, precision=jax.lax.Precision.HIGHEST)


if __name__ == "__main__":
    key = jax.random.PRNGKey(0)
    k_x, k_w, k_o, k_x2, k_w2, k_o2 = jax.random.split(key, 6)

    # --- case 1: small, aligned shapes ---------------------------------------
    batch, n_in, n_out, period = 8, 32, 32, 5
    xavier_std = (2.0 / (n_in + n_out)) ** 0.5
    w = jax.random.normal(k_w, (n_in, n_out), jnp.float32) * xavier_std
    o = jax.random.normal(k_o, (n_in, period), jnp.float32)
    bias = jnp.zeros((n_out,), jnp.float32)  # present in the module, NOT used in forward
    x = jax.random.normal(k_x, (batch, n_in), jnp.float32)
    time = jnp.int32(3)

    ref = reference(x, w, o, 3)

    out_bf16 = jax.block_until_ready(normal_hash_linear(x, w, o, time))
    assert out_bf16.shape == (batch, n_out)
    assert jnp.allclose(out_bf16, ref, atol=5e-2, rtol=5e-2), "bf16 path mismatch"

    out_f32 = jax.block_until_ready(
        normal_hash_linear(x, w, o, time, compute_dtype=jnp.float32))
    assert jnp.allclose(out_f32, ref, atol=2e-2, rtol=2e-2), "f32 path mismatch"

    # --- case 2: unaligned shapes (exercises padding + 2-parallel-block split)
    batch2, n_in2, n_out2, period2 = 24, 200, 136, 7
    xavier_std2 = (2.0 / (n_in2 + n_out2)) ** 0.5
    w2 = jax.random.normal(k_w2, (n_in2, n_out2), jnp.float32) * xavier_std2
    o2 = jax.random.normal(k_o2, (n_in2, period2), jnp.float32)
    x2 = jax.random.normal(k_x2, (batch2, n_in2), jnp.float32)
    time2 = jnp.int32(1)

    ref2 = reference(x2, w2, o2, 1)

    out2_bf16 = jax.block_until_ready(normal_hash_linear(x2, w2, o2, time2))
    assert out2_bf16.shape == (batch2, n_out2)
    assert jnp.allclose(out2_bf16, ref2, atol=5e-2, rtol=5e-2), "bf16 path mismatch (case 2)"

    out2_f32 = jax.block_until_ready(
        normal_hash_linear(x2, w2, o2, time2, compute_dtype=jnp.float32))
    assert jnp.allclose(out2_f32, ref2, atol=2e-2, rtol=2e-2), "f32 path mismatch (case 2)"

    print("KERNEL_OK")
</pallas_src>

<mosaic_0001>
module attributes {stable_mosaic.version = 11 : i64} {
  func.func @_matmul_kernel(%arg0: i32, %arg1: i32, %arg2: i32, %arg3: memref<16x128xbf16, #tpu.memory_space<vmem>>, %arg4: memref<128x128xbf16, #tpu.memory_space<vmem>>, %arg5: memref<16x128xf32, #tpu.memory_space<vmem>>, %arg6: memref<16x128xf32, #tpu.memory_space<vmem>>) attributes {dimension_semantics = [#tpu.dimension_semantics<parallel>, #tpu.dimension_semantics<parallel>, #tpu.dimension_semantics<arbitrary>], iteration_bounds = array<i64: 1, 1, 1>, scalar_prefetch = 0 : i64, scratch_operands = 1 : i64, tpu.core_type = #tpu.core_type<tc>, window_params = [{transform_indices = @transform_0, window_bounds = array<i64: 16, 128>}, {transform_indices = @transform_1, window_bounds = array<i64: 128, 128>}, {transform_indices = @transform_2, window_bounds = array<i64: 16, 128>}]} {
    %c0_i32 = arith.constant 0 : i32
    %0 = arith.cmpi eq, %arg2, %c0_i32 : i32
    %1 = arith.extui %0 : i1 to i32
    %c0_i32_0 = arith.constant 0 : i32
    %2 = arith.cmpi ne, %1, %c0_i32_0 : i32
    scf.if %2 {
      %cst_10 = arith.constant 0.000000e+00 : f32
      %12 = vector.broadcast %cst_10 : f32 to vector<16x128xf32>
      %c0_11 = arith.constant 0 : index
      %c0_12 = arith.constant 0 : index
      %13 = vector.load %arg6[%c0_11, %c0_12] : memref<16x128xf32, #tpu.memory_space<vmem>>, vector<16x128xf32>
      tpu.vector_store %arg6[%c0_11, %c0_12], %12 {strides = array<i32>} : memref<16x128xf32, #tpu.memory_space<vmem>>, vector<16x128xf32>,
    } else {
    }
    %c0 = arith.constant 0 : index
    %c0_1 = arith.constant 0 : index
    %3 = vector.load %arg6[%c0, %c0_1] : memref<16x128xf32, #tpu.memory_space<vmem>>, vector<16x128xf32>
    %c0_2 = arith.constant 0 : index
    %c0_3 = arith.constant 0 : index
    %4 = vector.load %arg3[%c0_2, %c0_3] : memref<16x128xbf16, #tpu.memory_space<vmem>>, vector<16x128xbf16>
    %c0_4 = arith.constant 0 : index
    %c0_5 = arith.constant 0 : index
    %5 = vector.load %arg4[%c0_4, %c0_5] : memref<128x128xbf16, #tpu.memory_space<vmem>>, vector<128x128xbf16>
    %cst = arith.constant dense<0.000000e+00> : vector<16x128xf32>
    %6 = tpu.matmul %4, %5, %cst {dimension_numbers = #tpu.dot_dimension_numbers<[1], [0], [0], [1], [0, 0, 1, 1], [], []>} : vector<16x128xbf16>, vector<128x128xbf16>, vector<16x128xf32> -> vector<16x128xf32>
    %7 = arith.addf %3, %6 : vector<16x128xf32>
    %c0_6 = arith.constant 0 : index
    %c0_7 = arith.constant 0 : index
    %8 = vector.load %arg6[%c0_6, %c0_7] : memref<16x128xf32, #tpu.memory_space<vmem>>, vector<16x128xf32>
    tpu.vector_store %arg6[%c0_6, %c0_7], %7 {strides = array<i32>} : memref<16x128xf32, #tpu.memory_space<vmem>>, vector<16x128xf32>,
    %c0_i32_8 = arith.constant 0 : i32
    %9 = arith.cmpi eq, %arg2, %c0_i32_8 : i32
    %10 = arith.extui %9 : i1 to i32
    %c0_i32_9 = arith.constant 0 : i32
    %11 = arith.cmpi ne, %10, %c0_i32_9 : i32
    scf.if %11 {
      %c0_10 = arith.constant 0 : index
      %c0_11 = arith.constant 0 : index
      %12 = vector.load %arg6[%c0_10, %c0_11] : memref<16x128xf32, #tpu.memory_space<vmem>>, vector<16x128xf32>
      %c0_12 = arith.constant 0 : index
      %c0_13 = arith.constant 0 : index
      %13 = vector.load %arg5[%c0_12, %c0_13] : memref<16x128xf32, #tpu.memory_space<vmem>>, vector<16x128xf32>
      tpu.vector_store %arg5[%c0_12, %c0_13], %12 {strides = array<i32>} : memref<16x128xf32, #tpu.memory_space<vmem>>, vector<16x128xf32>,
    } else {
    }
    return
  }
  func.func @transform_0(%arg0: i32, %arg1: i32, %arg2: i32) -> (i32, i32) {
    %c0_i32 = arith.constant 0 : i32
    return %arg0, %arg2 : i32, i32
  }
  func.func @transform_1(%arg0: i32, %arg1: i32, %arg2: i32) -> (i32, i32) {
    %c0_i32 = arith.constant 0 : i32
    return %arg2, %arg1 : i32, i32
  }
  func.func @transform_2(%arg0: i32, %arg1: i32, %arg2: i32) -> (i32, i32) {
    %c0_i32 = arith.constant 0 : i32
    return %arg0, %arg1 : i32, i32
  }
}

</mosaic_0001>

<llo_original>
// kernel: normal_hash_linear.1
$region0: #{normal_hash_linear.1}
  #allocation0 [shape = 'u32[]', space=smem, size = 0x4, offset = 0x4, fixed_abs, tag = 'smem constant byte address 0x4 - core index']
  #allocation1 [shape = 'u32[144,128]{1,0:T(1,128)}', space=vmem, size = 0x12000, scoped, tag = 'internal scratch']
  #allocation2 [shape = 'f32[16,128]{1,0:T(8,128)}', space=vmem, size = 0x2000, scoped, tag = 'scratch operand']
  %s0 = inlined_call_operand.vmem [shape: bf16[16,128], index: 0, kind: input, shape index: {}]
  %s1 = inlined_call_operand.vmem [shape: bf16[128,128], index: 1, kind: input, shape index: {}]
  %s2 = inlined_call_operand.vmem [shape: f32[16,128], index: 2, kind: output, shape index: {}]
  %s3 = sld [smem:[#allocation0]]
  $region26: #{normal_hash_linear.1} parent=0
    _
  %s5 = ssub.s32 1, %s3
  %s6 = scalar_select 0, %s5, %s3
  // Predicated region
  $region2: #{normal_hash_linear.1} parent=0 // pred_check
    _
  $region3: #{normal_hash_linear.1} parent=0 // pred_check_branch
    %8 = sbr.rel (0) target = $region5
  $region4: #{normal_hash_linear.1} parent=0 // pred_region
    _
  $region5: #{normal_hash_linear.1} parent=0 // pred_fallthru
    _
  // Predicated region
  $region6: #{normal_hash_linear.1} parent=0 // pred_check
    _
  $region7: #{normal_hash_linear.1} parent=0 // pred_check_branch
    %10 = sbr.rel (0) target = $region9
  $region8: #{normal_hash_linear.1} parent=0 // pred_region
    _
  $region9: #{normal_hash_linear.1} parent=0 // pred_fallthru
    _
  %p12 = scmp.eq.s32.totalorder 0, 0
  // Predicated region
  $region10: #{normal_hash_linear.1} parent=0 // pred_check
    %p13 = pneg %p12
  $region11: #{normal_hash_linear.1} parent=0 // pred_check_branch
    %15 = sbr.rel (%p13) target = $region13
  $region12: #{normal_hash_linear.1} parent=0 // pred_region
    %16 = vst [vmem:[#allocation2] sm:$0xff] 0.0
    %17 = vst [vmem:[#allocation2 + $0x8] sm:$0xff] 0.0
  $region13: #{normal_hash_linear.1} parent=0 // pred_fallthru
    _
  %v18 = vld [vmem:[#allocation2] sm:$0xff]
  %v19 = vld [vmem:[#allocation2 + $0x8] sm:$0xff]
  %v20 = vld [vmem:[%s0] sm:$0xf]
  %v21 = vld [vmem:[%s0 + $0x4] sm:$0xf]
  %v22 = vld [vmem:[%s1] sm:$0xf]
  %v23 = vld [vmem:[%s1 + $0x4] sm:$0xf]
  %v24 = vld [vmem:[%s1 + $0x8] sm:$0xf]
  %v25 = vld [vmem:[%s1 + $0xc] sm:$0xf]
  %v26 = vld [vmem:[%s1 + $0x10] sm:$0xf]
  %v27 = vld [vmem:[%s1 + $0x14] sm:$0xf]
  %v28 = vld [vmem:[%s1 + $0x18] sm:$0xf]
  %v29 = vld [vmem:[%s1 + $0x1c] sm:$0xf]
  %v30 = vld [vmem:[%s1 + $0x20] sm:$0xf]
  %v31 = vld [vmem:[%s1 + $0x24] sm:$0xf]
  %v32 = vld [vmem:[%s1 + $0x28] sm:$0xf]
  %v33 = vld [vmem:[%s1 + $0x2c] sm:$0xf]
  %v34 = vld [vmem:[%s1 + $0x30] sm:$0xf]
  %v35 = vld [vmem:[%s1 + $0x34] sm:$0xf]
  %v36 = vld [vmem:[%s1 + $0x38] sm:$0xf]
  %v37 = vld [vmem:[%s1 + $0x3c] sm:$0xf]
  %v40 = vunpack.c.l.b16 %v20
  %v41 = vunpack.c.l.b16 %v21
  %v42 = vpack.c.b16 %v41, %v40
  %v60 = vunpack.c.l.b16 %v22
  %v61 = vunpack.c.l.b16 %v23
  %v62 = vunpack.c.l.b16 %v24
  %v63 = vunpack.c.l.b16 %v25
  %v64 = vunpack.c.l.b16 %v26
  %v65 = vunpack.c.l.b16 %v27
  %v66 = vunpack.c.l.b16 %v28
  %v67 = vunpack.c.l.b16 %v29
  %v68 = vunpack.c.l.b16 %v30
  %v69 = vunpack.c.l.b16 %v31
  %v70 = vunpack.c.l.b16 %v32
  %v71 = vunpack.c.l.b16 %v33
  %v72 = vunpack.c.l.b16 %v34
  %v73 = vunpack.c.l.b16 %v35
  %v74 = vunpack.c.l.b16 %v36
  %v75 = vunpack.c.l.b16 %v37
  %v76 = vpack.c.b16 %v61, %v60
  %v77 = vpack.c.b16 %v63, %v62
  %v78 = vpack.c.b16 %v65, %v64
  %v79 = vpack.c.b16 %v67, %v66
  %v80 = vpack.c.b16 %v69, %v68
  %v81 = vpack.c.b16 %v71, %v70
  %v82 = vpack.c.b16 %v73, %v72
  %v83 = vpack.c.b16 %v75, %v74
  %92 = vmatprep.subr.bf16.mxu0 0
  %93 = vmatpush1.bf16.msra.mxu0 %v76
  %94 = vmatprep.subr.bf16.mxu0 0
  %95 = vmatpush1.bf16.msra.mxu0 %v77
  %96 = vmatprep.subr.bf16.mxu0 0
  %97 = vmatpush1.bf16.msra.mxu0 %v78
  %98 = vmatprep.subr.bf16.mxu0 0
  %99 = vmatpush1.bf16.msra.mxu0 %v79
  %100 = vmatprep.subr.bf16.mxu0 0
  %101 = vmatpush1.bf16.msra.mxu0 %v80
  %102 = vmatprep.subr.bf16.mxu0 0
  %103 = vmatpush1.bf16.msra.mxu0 %v81
  %104 = vmatprep.subr.bf16.mxu0 0
  %105 = vmatpush1.bf16.msra.mxu0 %v82
  %106 = vmatprep.subr.bf16.mxu0 0
  %107 = vmatpush1.bf16.msra.mxu0 %v83
  %108 = vmatprep.subr.bf16.mxu0 0
  %109 = vmatpush1.bf16.msra.mxu0 0
  %110 = vmatprep.subr.bf16.mxu0 0
  %111 = vmatpush1.bf16.msra.mxu0 0
  %112 = vmatprep.subr.bf16.mxu0 0
  %113 = vmatpush1.bf16.msra.mxu0 0
  %114 = vmatprep.subr.bf16.mxu0 0
  %115 = vmatpush1.bf16.msra.mxu0 0
  %116 = vmatprep.subr.bf16.mxu0 0
  %117 = vmatpush1.bf16.msra.mxu0 0
  %118 = vmatprep.subr.bf16.mxu0 0
  %119 = vmatpush1.bf16.msra.mxu0 0
  %120 = vmatprep.subr.bf16.mxu0 0
  %121 = vmatpush1.bf16.msra.mxu0 0
  %122 = vmatprep.subr.bf16.mxu0 0
  %123 = vmatpush1.bf16.msra.mxu0 0
  %124 = vmatprep.mubr.bf16.mxu0 0
  %125 = vmatmul.mubr.bf16.gmra.mrb[0].mxu0 %v42
  %v126 = vpop.f32.mrb[0].mxu0
  %v127 = vadd.f32 0.0, %v126
  %v128 = vpop.f32.mrb[0].mxu0
  %v129 = vpop.f32.mrb[0].mxu0
  %v130 = vadd.f32 0.0, %v129
  %v131 = vpop.f32.mrb[0].mxu0
  %132 = vdwg.mxu0
  %v133 = vadd.f32 %v18, %v127
  %v134 = vadd.f32 %v19, %v130
  %135 = vst [vmem:[#allocation2] sm:$0xff] %v133
  %136 = vst [vmem:[#allocation2 + $0x8] sm:$0xff] %v134
  // Predicated region
  $region14: #{normal_hash_linear.1} parent=0 // pred_check
    %p137 = pneg %p12
  $region15: #{normal_hash_linear.1} parent=0 // pred_check_branch
    %139 = sbr.rel (%p137) target = $region17
  $region16: #{normal_hash_linear.1} parent=0 // pred_region
    %v140 = vld [vmem:[#allocation2] sm:$0xff]
    %v141 = vld [vmem:[#allocation2 + $0x8] sm:$0xff]
    %142 = vst [vmem:[%s2] sm:$0xff] %v140
    %143 = vst [vmem:[%s2 + $0x8] sm:$0xff] %v141
  $region17: #{normal_hash_linear.1} parent=0 // pred_fallthru
    _
  // Predicated region
  $region18: #{normal_hash_linear.1} parent=0 // pred_check
    _
  $region19: #{normal_hash_linear.1} parent=0 // pred_check_branch
    %145 = sbr.rel (0) target = $region21
  $region20: #{normal_hash_linear.1} parent=0 // pred_region
    _
  $region21: #{normal_hash_linear.1} parent=0 // pred_fallthru
    _
  // Predicated region
  $region22: #{normal_hash_linear.1} parent=0 // pred_check
    _
  $region23: #{normal_hash_linear.1} parent=0 // pred_check_branch
    %147 = sbr.rel (0) target = $region25
  $region24: #{normal_hash_linear.1} parent=0 // pred_region
    _
  $region25: #{normal_hash_linear.1} parent=0 // pred_fallthru
    _

</llo_original>
